<compile_context>
chip_gen: v7x
topology: tpu7x:2x2x1
jax: 0.10.0
libtpu: 0.0.40
codegen_flags: <defaults>
</compile_context>

<pallas_src>
import functools

import jax
import jax.numpy as jnp
from jax.experimental import pallas as pl
from jax.experimental.pallas import tpu as pltpu

_LANES = 128
_TILE_ROWS_MAX = 4096            # 4096 x 128 x f32 = 2 MiB per block per stream
_VMEM_LIMIT = 48 * 1024 * 1024   # <= v7x physical (64 MiB); plenty of slack for our ~16 MiB


def _cdiv(a, b):
    return (a + b - 1) // b


# --------------------------------------------------------------------------- kernels


def _l1_sum_kernel(*refs, rows, tile_rows, has_weight, mask_last):
    """Accumulate sum(|pred - target| [* weight]) over a sequential 1-D grid."""
    if has_weight:
        pred_ref, target_ref, weight_ref, out_ref, acc_ref = refs
    else:
        pred_ref, target_ref, out_ref, acc_ref = refs
        weight_ref = None

    i = pl.program_id(0)
    nblk = pl.num_programs(0)

    @pl.when(i == 0)
    def _():
        acc_ref[...] = jnp.zeros_like(acc_ref)

    diff = jnp.abs(pred_ref[...].astype(jnp.float32)
                   - target_ref[...].astype(jnp.float32))
    if has_weight:
        diff = diff * weight_ref[...].astype(jnp.float32)

    acc_rows = acc_ref.shape[0]

    def accumulate(d):
        if acc_rows == 8:
            # VPU-only partial reduction: add aligned (8,128) vreg tiles together.
            acc_ref[...] += d.reshape(tile_rows // 8, 8, _LANES).sum(axis=0)
        else:
            # Small ragged-row case (rows < 8-multiple): perf irrelevant.
            acc_ref[...] += jnp.sum(d, axis=0, keepdims=True)

    if mask_last:
        # Only the last block can contain out-of-bounds (garbage) rows; interior blocks
        # skip the iota/compare/where entirely (pl.when cold path is skipped at runtime).
        @pl.when(i == nblk - 1)
        def _():
            row_ids = jax.lax.broadcasted_iota(jnp.int32, (tile_rows, _LANES), 0)
            valid = (i * tile_rows + row_ids) < rows
            accumulate(jnp.where(valid, diff, 0.0))

        @pl.when(i != nblk - 1)
        def _():
            accumulate(diff)
    else:
        accumulate(diff)

    @pl.when(i == nblk - 1)
    def _():
        # One sublane reduce at the very end; per-lane partials go to HBM (1x128).
        out_ref[...] = jnp.sum(acc_ref[...], axis=0, keepdims=True)


def _l1_elem_kernel(*refs, has_weight):
    """Elementwise |pred - target| [* weight] (reduction='none')."""
    if has_weight:
        pred_ref, target_ref, weight_ref, out_ref = refs
    else:
        pred_ref, target_ref, out_ref = refs
        weight_ref = None

    loss = jnp.abs(pred_ref[...].astype(jnp.float32)
                   - target_ref[...].astype(jnp.float32))
    if has_weight:
        loss = loss * weight_ref[...].astype(jnp.float32)
    # TODO(synk): bf16-out variant would halve write traffic, but PyTorch's pred.float()
    # semantics produce f32, so we keep f32.
    out_ref[...] = loss


# --------------------------------------------------------------------------- pallas_call wrappers


def _head_view(x, rows):
    """View the first rows*128 elements of x as a lane-dense (rows, 128) slab.

    Zero-copy (pure reshape) when x.size == rows*128; for ragged sizes only the
    aligned prefix is taken (the <=127-element tail is handled in XLA by the caller).
    """
    flat = x.reshape(-1)
    main = rows * _LANES
    if flat.shape[0] != main:
        # TODO(synk): prefix slice may still materialize a copy in XLA; strictly cheaper
        # than the previous full-array jnp.pad + output slice.
        flat = flat[:main]
    return flat.reshape(rows, _LANES)


def _run_sum(pred, target, weight, rows):
    has_weight = weight is not None
    tile_rows = rows if rows <= _TILE_ROWS_MAX else _TILE_ROWS_MAX
    nblocks = _cdiv(rows, tile_rows)
    mask_last = (rows % tile_rows) != 0
    acc_rows = 8 if tile_rows % 8 == 0 else 1

    inputs = [_head_view(pred, rows), _head_view(target, rows)]
    if has_weight:
        inputs.append(_head_view(weight, rows))

    in_spec = pl.BlockSpec((tile_rows, _LANES), lambda i: (i, 0))
    kernel = functools.partial(
        _l1_sum_kernel, rows=rows, tile_rows=tile_rows,
        has_weight=has_weight, mask_last=mask_last)

    in_bytes = sum(int(x.size) * x.dtype.itemsize for x in inputs)
    cost = pl.CostEstimate(
        flops=(4 if has_weight else 3) * rows * _LANES,
        transcendentals=0,
        bytes_accessed=in_bytes + _LANES * 4)

    partials = pl.pallas_call(
        kernel,
        out_shape=jax.ShapeDtypeStruct((1, _LANES), jnp.float32),
        grid_spec=pltpu.PrefetchScalarGridSpec(
            num_scalar_prefetch=0,
            grid=(nblocks,),
            in_specs=[in_spec] * len(inputs),
            out_specs=pl.BlockSpec((1, _LANES), lambda i: (0, 0)),
            scratch_shapes=[pltpu.VMEM((acc_rows, _LANES), jnp.float32)],
        ),
        compiler_params=pltpu.CompilerParams(
            dimension_semantics=("arbitrary",),
            vmem_limit_bytes=_VMEM_LIMIT),
        cost_estimate=cost,
    )(*inputs)
    return jnp.sum(partials)


def _run_elem(pred, target, weight, rows):
    has_weight = weight is not None
    tile_rows = rows if rows <= _TILE_ROWS_MAX else _TILE_ROWS_MAX
    nblocks = _cdiv(rows, tile_rows)

    inputs = [_head_view(pred, rows), _head_view(target, rows)]
    if has_weight:
        inputs.append(_head_view(weight, rows))

    spec = pl.BlockSpec((tile_rows, _LANES), lambda i: (i, 0))
    kernel = functools.partial(_l1_elem_kernel, has_weight=has_weight)

    in_bytes = sum(int(x.size) * x.dtype.itemsize for x in inputs)
    cost = pl.CostEstimate(
        flops=(3 if has_weight else 2) * rows * _LANES,
        transcendentals=0,
        bytes_accessed=in_bytes + rows * _LANES * 4)

    return pl.pallas_call(
        kernel,
        out_shape=jax.ShapeDtypeStruct((rows, _LANES), jnp.float32),
        grid_spec=pltpu.PrefetchScalarGridSpec(
            num_scalar_prefetch=0,
            grid=(nblocks,),
            in_specs=[spec] * len(inputs),
            out_specs=spec,
        ),
        compiler_params=pltpu.CompilerParams(
            dimension_semantics=("parallel",),
            vmem_limit_bytes=_VMEM_LIMIT),
        cost_estimate=cost,
    )(*inputs)


# --------------------------------------------------------------------------- wrapper


@functools.partial(jax.jit, static_argnames=("reduction",))
def _l1_loss_core(pred, target, weight, reduction):
    total = pred.size
    rows = total // _LANES          # full lane-dense rows (zero-copy reshape)
    main = rows * _LANES
    has_weight = weight is not None

    def tail_loss():
        # <=127 trailing elements for ragged sizes, handled in plain XLA.
        p = pred.reshape(-1)[main:].astype(jnp.float32)
        t = target.reshape(-1)[main:].astype(jnp.float32)
        l = jnp.abs(p - t)
        if has_weight:
            l = l * weight.reshape(-1)[main:].astype(jnp.float32)
        return l

    if reduction == "none":
        parts = []
        if rows > 0:
            parts.append(_run_elem(pred, target, weight, rows).reshape(-1))
        if main != total:
            parts.append(tail_loss())
        flat = parts[0] if len(parts) == 1 else jnp.concatenate(parts)
        return flat.reshape(pred.shape)

    # "sum" (also backs "mean")
    if rows > 0 and main != total:
        return _run_sum(pred, target, weight, rows) + jnp.sum(tail_loss())
    if rows > 0:
        return _run_sum(pred, target, weight, rows)
    return jnp.sum(tail_loss())


def l1_loss(pred, target, weight=None, avg_factor=None,
            reduction="mean", loss_weight=None, beta=1.0):
    """JAX/Pallas equivalent of L1Loss.forward.

    Notes:
      * `beta` is accepted for interface parity but unused -- the reference forward
        computes plain |pred - target| (not the smooth-L1 piecewise form).
      * reduction='mean' without avg_factor divides by the element count (not the
        sum of weights), matching weight_reduce_loss semantics.
    """
    del beta  # TODO(synk): reference forward ignores beta; kept for API parity.

    if reduction == "none":
        loss = _l1_loss_core(pred, target, weight, "none")
    elif reduction in ("sum", "mean"):
        s = _l1_loss_core(pred, target, weight, "sum")
        if reduction == "sum":
            loss = s
        elif avg_factor is not None:
            loss = s / jnp.asarray(avg_factor, dtype=jnp.float32)
        else:
            loss = s / jnp.float32(pred.size)
    else:
        raise ValueError(f"unknown reduction: {reduction}")

    if loss_weight is not None:
        loss = loss * jnp.float32(loss_weight)
    return loss


# --------------------------------------------------------------------------- demo / checks

if __name__ == "__main__":
    key = jax.random.PRNGKey(0)
    k1, k2, k3 = jax.random.split(key, 3)

    # NCHW layout, small shapes (2*4*16*16 = 2048 elements -> zero-copy aligned path).
    pred = jax.random.normal(k1, (2, 4, 16, 16), dtype=jnp.float32)
    target = jax.random.normal(k2, (2, 4, 16, 16), dtype=jnp.float32)
    weight = jax.random.uniform(k3, (2, 4, 16, 16), dtype=jnp.float32)

    loss_mean = l1_loss(pred, target, weight=weight, reduction="mean", loss_weight=0.5)
    loss_sum = l1_loss(pred, target, reduction="sum")                      # no-weight kernel
    loss_none = l1_loss(pred, target, weight=weight, reduction="none")
    loss_avg = l1_loss(pred, target, weight=weight, reduction="mean", avg_factor=100.0)

    # bf16 inputs stay bf16 through the DMA; upcast happens inside the kernel.
    pred_bf, target_bf = pred.astype(jnp.bfloat16), target.astype(jnp.bfloat16)
    loss_bf = l1_loss(pred_bf, target_bf, reduction="sum")

    # Ragged sizes: 255 elements -> kernel on the 128-element head, XLA on the 127 tail.
    pred_u = jax.random.normal(k1, (3, 5, 17), dtype=jnp.float32)
    target_u = jax.random.normal(k2, (3, 5, 17), dtype=jnp.float32)
    loss_u_mean = l1_loss(pred_u, target_u, reduction="mean")
    loss_u_none = l1_loss(pred_u, target_u, reduction="none")

    # Tiny ragged (<128 elements) -> pure-XLA fallback path.
    pred_t = jax.random.normal(k1, (3, 5, 7), dtype=jnp.float32)
    target_t = jax.random.normal(k2, (3, 5, 7), dtype=jnp.float32)
    loss_t_mean = l1_loss(pred_t, target_t, reduction="mean")

    # Multi-block sum with a partial last block (rows=4100 > tile 4096) -> masked path.
    pred_m = jax.random.normal(k1, (4100, 128), dtype=jnp.float32)
    target_m = jax.random.normal(k2, (4100, 128), dtype=jnp.float32)
    loss_m_sum = l1_loss(pred_m, target_m, reduction="sum")

    jax.block_until_ready((loss_mean, loss_sum, loss_none, loss_avg, loss_bf,
                           loss_u_mean, loss_u_none, loss_t_mean, loss_m_sum))

    # Reference checks in plain JAX.
    ref_elem = jnp.abs(pred - target) * weight
    assert jnp.allclose(loss_mean, 0.5 * jnp.mean(ref_elem), rtol=1e-5, atol=1e-5)
    assert jnp.allclose(loss_sum, jnp.sum(jnp.abs(pred - target)), rtol=1e-5, atol=1e-4)
    assert loss_none.shape == pred.shape and loss_none.dtype == jnp.float32
    assert jnp.allclose(loss_none, ref_elem, rtol=1e-6, atol=1e-6)
    assert jnp.allclose(loss_avg, jnp.sum(ref_elem) / 100.0, rtol=1e-5, atol=1e-5)

    ref_bf = jnp.sum(jnp.abs(pred_bf.astype(jnp.float32) - target_bf.astype(jnp.float32)))
    assert jnp.allclose(loss_bf, ref_bf, rtol=1e-5, atol=1e-3)

    ref_u = jnp.abs(pred_u - target_u)
    assert jnp.allclose(loss_u_mean, jnp.mean(ref_u), rtol=1e-5, atol=1e-5)
    assert loss_u_none.shape == pred_u.shape
    assert jnp.allclose(loss_u_none, ref_u, rtol=1e-6, atol=1e-6)

    ref_t = jnp.abs(pred_t - target_t)
    assert jnp.allclose(loss_t_mean, jnp.mean(ref_t), rtol=1e-5, atol=1e-5)

    ref_m = jnp.sum(jnp.abs(pred_m - target_m))
    assert jnp.allclose(loss_m_sum, ref_m, rtol=1e-4, atol=1e-2)

    print("KERNEL_OK")
</pallas_src>

<mosaic_0001>
module attributes {stable_mosaic.version = 11 : i64} {
  func.func @_l1_sum_kernel(%arg0: i32, %arg1: memref<16x128xf32, #tpu.memory_space<vmem>>, %arg2: memref<16x128xf32, #tpu.memory_space<vmem>>, %arg3: memref<16x128xf32, #tpu.memory_space<vmem>>, %arg4: memref<1x128xf32, #tpu.memory_space<vmem>>, %arg5: memref<8x128xf32, #tpu.memory_space<vmem>>) attributes {dimension_semantics = [#tpu.dimension_semantics<arbitrary>], iteration_bounds = array<i64: 1>, scalar_prefetch = 0 : i64, scratch_operands = 1 : i64, tpu.core_type = #tpu.core_type<tc>, window_params = [{transform_indices = @transform_0, window_bounds = array<i64: 16, 128>}, {transform_indices = @transform_1, window_bounds = array<i64: 16, 128>}, {transform_indices = @transform_2, window_bounds = array<i64: 16, 128>}, {pipeline_mode = #tpu.pipeline_mode<synchronous>, transform_indices = @transform_3, window_bounds = array<i64: 1, 128>}]} {
    %c0_i32 = arith.constant 0 : i32
    %0 = arith.cmpi eq, %arg0, %c0_i32 : i32
    %1 = arith.extui %0 : i1 to i32
    %c0_i32_0 = arith.constant 0 : i32
    %2 = arith.cmpi ne, %1, %c0_i32_0 : i32
    scf.if %2 {
      %cst_12 = arith.constant 0.000000e+00 : f32
      %17 = vector.broadcast %cst_12 : f32 to vector<8x128xf32>
      %c0_13 = arith.constant 0 : index
      %c0_14 = arith.constant 0 : index
      %18 = vector.load %arg5[%c0_13, %c0_14] : memref<8x128xf32, #tpu.memory_space<vmem>>, vector<8x128xf32>
      tpu.vector_store %arg5[%c0_13, %c0_14], %17 {strides = array<i32>} : memref<8x128xf32, #tpu.memory_space<vmem>>, vector<8x128xf32>,
    } else {
    }
    %c0 = arith.constant 0 : index
    %c0_1 = arith.constant 0 : index
    %3 = vector.load %arg1[%c0, %c0_1] : memref<16x128xf32, #tpu.memory_space<vmem>>, vector<16x128xf32>
    %c0_2 = arith.constant 0 : index
    %c0_3 = arith.constant 0 : index
    %4 = vector.load %arg2[%c0_2, %c0_3] : memref<16x128xf32, #tpu.memory_space<vmem>>, vector<16x128xf32>
    %5 = arith.subf %3, %4 : vector<16x128xf32>
    %6 = math.absf %5 : vector<16x128xf32>
    %c0_4 = arith.constant 0 : index
    %c0_5 = arith.constant 0 : index
    %7 = vector.load %arg3[%c0_4, %c0_5] : memref<16x128xf32, #tpu.memory_space<vmem>>, vector<16x128xf32>
    %8 = arith.mulf %6, %7 : vector<16x128xf32>
    %c0_6 = arith.constant 0 : index
    %c0_7 = arith.constant 0 : index
    %9 = vector.load %arg5[%c0_6, %c0_7] : memref<8x128xf32, #tpu.memory_space<vmem>>, vector<8x128xf32>
    %10 = vector.shape_cast %8 : vector<16x128xf32> to vector<2x8x128xf32>
    %cst = arith.constant dense<0.000000e+00> : vector<8x128xf32>
    %11 = vector.multi_reduction <add>, %10, %cst [0] : vector<2x8x128xf32> to vector<8x128xf32>
    %12 = arith.addf %9, %11 : vector<8x128xf32>
    %c0_8 = arith.constant 0 : index
    %c0_9 = arith.constant 0 : index
    %13 = vector.load %arg5[%c0_8, %c0_9] : memref<8x128xf32, #tpu.memory_space<vmem>>, vector<8x128xf32>
    tpu.vector_store %arg5[%c0_8, %c0_9], %12 {strides = array<i32>} : memref<8x128xf32, #tpu.memory_space<vmem>>, vector<8x128xf32>,
    %c0_i32_10 = arith.constant 0 : i32
    %14 = arith.cmpi eq, %arg0, %c0_i32_10 : i32
    %15 = arith.extui %14 : i1 to i32
    %c0_i32_11 = arith.constant 0 : i32
    %16 = arith.cmpi ne, %15, %c0_i32_11 : i32
    scf.if %16 {
      %c0_12 = arith.constant 0 : index
      %c0_13 = arith.constant 0 : index
      %17 = vector.load %arg5[%c0_12, %c0_13] : memref<8x128xf32, #tpu.memory_space<vmem>>, vector<8x128xf32>
      %cst_14 = arith.constant dense<0.000000e+00> : vector<128xf32>
      %18 = vector.multi_reduction <add>, %17, %cst_14 [0] : vector<8x128xf32> to vector<128xf32>
      %19 = vector.shape_cast %18 : vector<128xf32> to vector<1x128xf32>
      %c0_15 = arith.constant 0 : index
      %c0_16 = arith.constant 0 : index
      %20 = vector.load %arg4[%c0_15, %c0_16] : memref<1x128xf32, #tpu.memory_space<vmem>>, vector<1x128xf32>
      tpu.vector_store %arg4[%c0_15, %c0_16], %19 {strides = array<i32>} : memref<1x128xf32, #tpu.memory_space<vmem>>, vector<1x128xf32>,
    } else {
    }
    return
  }
  func.func @transform_0(%arg0: i32) -> (i32, i32) {
    %c0_i32 = arith.constant 0 : i32
    %c0_i32_0 = arith.constant 0 : i32
    return %arg0, %c0_i32 : i32, i32
  }
  func.func @transform_1(%arg0: i32) -> (i32, i32) {
    %c0_i32 = arith.constant 0 : i32
    %c0_i32_0 = arith.constant 0 : i32
    return %arg0, %c0_i32 : i32, i32
  }
  func.func @transform_2(%arg0: i32) -> (i32, i32) {
    %c0_i32 = arith.constant 0 : i32
    %c0_i32_0 = arith.constant 0 : i32
    return %arg0, %c0_i32 : i32, i32
  }
  func.func @transform_3(%arg0: i32) -> (i32, i32) {
    %c0_i32 = arith.constant 0 : i32
    %c0_i32_0 = arith.constant 0 : i32
    %c0_i32_1 = arith.constant 0 : i32
    return %c0_i32, %c0_i32_0 : i32, i32
  }
}

</mosaic_0001>

<llo_original>
// kernel: _l1_loss_core.1
$region0: #{_l1_loss_core.1}
  #allocation0 [shape = 'u32[]', space=smem, size = 0x4, offset = 0x4, fixed_abs, tag = 'smem constant byte address 0x4 - core index']
  #allocation1 [shape = 'u32[144,128]{1,0:T(1,128)}', space=vmem, size = 0x12000, scoped, tag = 'internal scratch']
  #allocation2 [shape = 'f32[8,128]{1,0:T(8,128)}', space=vmem, size = 0x1000, scoped, tag = 'scratch operand']
  %s0 = inlined_call_operand.vmem [shape: f32[16,128], index: 0, kind: input, shape index: {}]
  %s1 = inlined_call_operand.vmem [shape: f32[16,128], index: 1, kind: input, shape index: {}]
  %s2 = inlined_call_operand.vmem [shape: f32[16,128], index: 2, kind: input, shape index: {}]
  %s3 = inlined_call_operand.vmem [shape: f32[1,128], index: 3, kind: output, shape index: {}]
  %s4 = sld [smem:[#allocation0]]
  $region30: #{_l1_loss_core.1} parent=0
    _
  %s6 = ssub.s32 1, %s4
  %s7 = scalar_select 0, %s6, %s4
  // Predicated region
  $region2: #{_l1_loss_core.1} parent=0 // pred_check
    _
  $region3: #{_l1_loss_core.1} parent=0 // pred_check_branch
    %9 = sbr.rel (0) target = $region5
  $region4: #{_l1_loss_core.1} parent=0 // pred_region
    _
  $region5: #{_l1_loss_core.1} parent=0 // pred_fallthru
    _
  // Predicated region
  $region6: #{_l1_loss_core.1} parent=0 // pred_check
    _
  $region7: #{_l1_loss_core.1} parent=0 // pred_check_branch
    %11 = sbr.rel (0) target = $region9
  $region8: #{_l1_loss_core.1} parent=0 // pred_region
    _
  $region9: #{_l1_loss_core.1} parent=0 // pred_fallthru
    _
  // Predicated region
  $region10: #{_l1_loss_core.1} parent=0 // pred_check
    _
  $region11: #{_l1_loss_core.1} parent=0 // pred_check_branch
    %13 = sbr.rel (0) target = $region13
  $region12: #{_l1_loss_core.1} parent=0 // pred_region
    _
  $region13: #{_l1_loss_core.1} parent=0 // pred_fallthru
    _
  %p14 = scmp.eq.s32.totalorder 0, 0
  // Predicated region
  $region14: #{_l1_loss_core.1} parent=0 // pred_check
    %p15 = pneg %p14
  $region15: #{_l1_loss_core.1} parent=0 // pred_check_branch
    %17 = sbr.rel (%p15) target = $region17
  $region16: #{_l1_loss_core.1} parent=0 // pred_region
    %18 = vst [vmem:[#allocation2] sm:$0xff] 0.0
  $region17: #{_l1_loss_core.1} parent=0 // pred_fallthru
    _
  %v19 = vld [vmem:[%s0] sm:$0xff]
  %v20 = vld [vmem:[%s0 + $0x8] sm:$0xff]
  %v21 = vld [vmem:[%s1] sm:$0xff]
  %v22 = vld [vmem:[%s1 + $0x8] sm:$0xff]
  %v23 = vsub.f32 %v19, %v21
  %v24 = vsub.f32 %v20, %v22
  %v25 = vand.u32 2147483647, %v23
  %v26 = vand.u32 2147483647, %v24
  %v27 = vld [vmem:[%s2] sm:$0xff]
  %v28 = vld [vmem:[%s2 + $0x8] sm:$0xff]
  %v29 = vmul.f32 %v25, %v27
  %v30 = vmul.f32 %v26, %v28
  %v31 = vld [vmem:[#allocation2] sm:$0xff]
  %v32 = vadd.f32 %v29, %v30
  %v33 = vadd.f32 %v31, %v32
  %34 = vst [vmem:[#allocation2] sm:$0xff] %v33
  // Predicated region
  $region18: #{_l1_loss_core.1} parent=0 // pred_check
    %p35 = pneg %p14
  $region19: #{_l1_loss_core.1} parent=0 // pred_check_branch
    %37 = sbr.rel (%p35) target = $region21
  $region20: #{_l1_loss_core.1} parent=0 // pred_region
    %v38 = vld [vmem:[#allocation2] sm:$0xff]
    %v39 = vrot.slane %v38, 4
    %v40 = vadd.f32 %v38, %v39
    %v41 = vrot.slane %v40, 2
    %v42 = vadd.f32 %v40, %v41
    %v43 = vrot.slane %v42, 1
    %v44 = vadd.f32 %v42, %v43
    %45 = vst [vmem:[%s3] sm:$0x1] %v44
  $region21: #{_l1_loss_core.1} parent=0 // pred_fallthru
    _
  // Predicated region
  $region22: #{_l1_loss_core.1} parent=0 // pred_check
    _
  $region23: #{_l1_loss_core.1} parent=0 // pred_check_branch
    %47 = sbr.rel (0) target = $region25
  $region24: #{_l1_loss_core.1} parent=0 // pred_region
    _
  $region25: #{_l1_loss_core.1} parent=0 // pred_fallthru
    _
  // Predicated region
  $region26: #{_l1_loss_core.1} parent=0 // pred_check
    _
  $region27: #{_l1_loss_core.1} parent=0 // pred_check_branch
    %49 = sbr.rel (0) target = $region29
  $region28: #{_l1_loss_core.1} parent=0 // pred_region
    _
  $region29: #{_l1_loss_core.1} parent=0 // pred_fallthru
    _

</llo_original>
